<compile_context>
chip_gen: v5e
topology: v5e:2x2
jax: 0.10.0
libtpu: 0.0.40
codegen_flags: <defaults>
</compile_context>

<pallas_src>
import functools
import math

import numpy as np
import jax
import jax.numpy as jnp
from jax.experimental import pallas as pl
from jax.experimental.pallas import tpu as pltpu


_MARGIN = 1000.0


# --------------------------------------------------------------------------
# Sizing helpers
# --------------------------------------------------------------------------
def _round_up(x, m):
    return ((x + m - 1) // m) * m


def _vmem_params():
    """Generation-aware (budget_for_tiles, vmem_limit_bytes)."""
    phys = 64 * 1024 * 1024                      # v7x-safe fallback
    try:
        info = pltpu.get_tpu_info()
        cap = getattr(info, "vmem_capacity_bytes", None)
        if cap:
            phys = int(cap)
    except Exception:
        pass
    limit = max(32 * 1024 * 1024, min(phys - (16 << 20), (3 * phys) // 4))
    budget = (3 * limit) // 4                    # headroom for Mosaic scratch
    return budget, limit


def _sublane_multiple(itemsize):
    # f32 -> 8, bf16/f16 -> 16, int8/fp8 -> 32 (packed sublane layout).
    return 8 * max(1, 4 // max(1, itemsize))


def _choose_block_rows(packed_rows, width, itemsize, extra_row_bytes, budget, sub):
    """Packed-row tile size from the padded, double-buffered VMEM footprint."""
    lanes = _round_up(width, 128)
    # 3 inputs x 2 buffers + ~8 lane-rows of f32 intermediates (d / diff / loss
    # / mask temporaries) + any per-row output-block bytes.
    per_row = 3 * 2 * lanes * itemsize + 8 * lanes * 4 + extra_row_bytes
    fixed = 2 * _round_up(width, 8) * 128 * 4 + 8 * 128 * 4 + (1 << 20)
    cap = max(sub, int((budget - fixed) // per_row))
    cap = min(cap, 32768)
    if packed_rows <= cap:
        # Round UP so the (…, 8, 128) sublane fold in the kernel stays legal;
        # over-read rows are masked / clipped.
        return _round_up(packed_rows, sub)
    return max(sub, (cap // sub) * sub)


def _segment_matrix(feat, group):
    """(group*feat, 128) 0/1 matrix: column c sums feature segment (c % group).

    d @ S puts the distance difference of packed row p / original row
    p*group + (c % group) into column c, replicated 128/group times, so the
    post-matmul tile is fully lane-dense.
    """
    width = group * feat
    seg_of_lane = np.arange(width)[:, None] // feat
    seg_of_col = np.arange(128)[None, :] % group
    return jnp.asarray((seg_of_lane == seg_of_col).astype(np.float32))


# --------------------------------------------------------------------------
# Kernels
# --------------------------------------------------------------------------
def _row_diff(ex_ref, pos_ref, neg_ref, seg_ref, use_mxu):
    """(tbp, 128) lane-dense per-row distance difference."""
    ex = ex_ref[...].astype(jnp.float32)         # no-op for f32 inputs
    pos = pos_ref[...].astype(jnp.float32)
    neg = neg_ref[...].astype(jnp.float32)
    # Fused: one elementwise pass gives neg_dist - pos_dist contributions.
    d = jnp.square(ex - neg) - jnp.square(ex - pos)          # (tbp, W)
    if use_mxu:
        # Segment/row sums on the idle MXU (separate VLIW slot -> ~free).
        return jnp.dot(d, seg_ref[...], preferred_element_type=jnp.float32)
    # Fallback for odd W (non-packable, non-128-multiple D): XLU row sum,
    # broadcast lane-dense so the accumulation path is identical.
    diff = jnp.sum(d, axis=-1, keepdims=True)
    return jnp.broadcast_to(diff, (d.shape[0], 128))


def _repen_reduce_kernel(ex_ref, pos_ref, neg_ref, seg_ref, out_ref, acc_ref, *,
                         total_rows, rows_per_tile, group, tiles_per_split,
                         do_mean, need_mask, use_mxu):
    """Accumulating kernel for reduction='mean' / 'sum'."""
    split = pl.program_id(0)      # megacore split (parallel axis)
    step = pl.program_id(1)       # batch-tile index within the split

    @pl.when(step == 0)
    def _():
        acc_ref[...] = jnp.zeros_like(acc_ref)

    diff = _row_diff(ex_ref, pos_ref, neg_ref, seg_ref, use_mxu)   # (tbp, 128)
    loss = jnp.maximum(_MARGIN - diff, 0.0)

    if need_mask:
        # Mask padded / over-read / overhang rows AFTER the relu so garbage
        # (possibly NaN/Inf) can never leak into the accumulator.
        tile = split * tiles_per_split + step                      # logical tile
        p = jax.lax.broadcasted_iota(jnp.int32, loss.shape, 0)
        if group > 1:
            c = jax.lax.broadcasted_iota(jnp.int32, loss.shape, 1)
            rows = tile * rows_per_tile + p * group + (c % group)
        else:
            rows = tile * rows_per_tile + p
        loss = jnp.where(rows < total_rows, loss, 0.0)

    # Hot loop: fold sublane groups into the fixed lane-dense accumulator with
    # plain vreg adds; no per-step cross-lane reduce, no narrow masked stores.
    acc_ref[...] += jnp.sum(loss.reshape(-1, 8, 128), axis=0)

    @pl.when(step == pl.num_programs(1) - 1)
    def _():
        # Each original row is replicated across 128 // group lanes.
        total = jnp.sum(acc_ref[...]) * (float(group) / 128.0)
        if do_mean:
            total = total * (1.0 / float(total_rows))
        out_ref[...] = jnp.broadcast_to(total, out_ref.shape).astype(out_ref.dtype)


def _repen_none_kernel(ex_ref, pos_ref, neg_ref, seg_ref, out_ref, *,
                       group, use_mxu):
    """Per-row loss kernel for reduction='none' (writes a (tbp, group) tile)."""
    diff = _row_diff(ex_ref, pos_ref, neg_ref, seg_ref, use_mxu)   # (tbp, 128)
    loss = jnp.maximum(_MARGIN - diff, 0.0)
    # Columns 0..group-1 hold the losses of original rows p*group + 0..group-1;
    # the output block spans the full last dim of the (Bp, group) array, so the
    # writeback DMA is contiguous in HBM.
    out_ref[...] = loss[:, :group]


# --------------------------------------------------------------------------
# Wrapper
# --------------------------------------------------------------------------
def repen_loss(example, positive, negative, reduction="mean", block_rows=None):
    """Pallas implementation of REPENLoss.forward (reduction over the last dim).

    example, positive, negative: (..., D) float arrays of identical shape.
    Returns: scalar for 'mean'/'sum', array of the leading shape for 'none'.
    """
    assert example.shape == positive.shape == negative.shape
    lead = example.shape[:-1]
    D = int(example.shape[-1])
    B = math.prod(lead) if lead else 1

    dtype = jnp.result_type(example, positive, negative)
    if dtype not in (jnp.dtype(jnp.float32), jnp.dtype(jnp.bfloat16),
                     jnp.dtype(jnp.float16)):
        dtype = jnp.dtype(jnp.float32)
    ex2 = example.reshape(B, D).astype(dtype)
    po2 = positive.reshape(B, D).astype(dtype)
    ne2 = negative.reshape(B, D).astype(dtype)

    # Lane packing: (B, D) -> (B//g, g*D) is a pure metadata reshape of the
    # contiguous rows; only done when it needs no padding copy.
    if 0 < D <= 128 and 128 % D == 0 and B % (128 // D) == 0 and B > 0:
        g = 128 // D
    else:
        g = 1
    W = g * D
    Bp = max(1, B // g)
    ex2 = ex2.reshape(Bp, W)
    po2 = po2.reshape(Bp, W)
    ne2 = ne2.reshape(Bp, W)
    seg = _segment_matrix(D, g)
    use_mxu = (W % 128 == 0)      # MXU segment-sum for aligned widths

    itemsize = dtype.itemsize
    sub = _sublane_multiple(itemsize)
    budget, vmem_limit = _vmem_params()
    extra = 2 * 128 * 4 if reduction == "none" else 0

    if block_rows is None:
        tbp = _choose_block_rows(Bp, W, itemsize, extra, budget, sub)
    else:
        tbp = max(1, pl.cdiv(int(block_rows), g))
        tbp = _round_up(min(tbp, Bp), sub)
    num_tiles = pl.cdiv(Bp, tbp)

    if reduction == "none":
        out = pl.pallas_call(
            functools.partial(_repen_none_kernel, group=g, use_mxu=use_mxu),
            out_shape=jax.ShapeDtypeStruct((Bp, g), jnp.float32),
            grid_spec=pltpu.PrefetchScalarGridSpec(
                num_scalar_prefetch=0,
                grid=(num_tiles,),
                in_specs=[pl.BlockSpec((tbp, W), lambda i: (i, 0))] * 3
                + [pl.BlockSpec((W, 128), lambda i: (0, 0))],
                out_specs=pl.BlockSpec((tbp, g), lambda i: (i, 0)),
            ),
            compiler_params=pltpu.CompilerParams(
                dimension_semantics=("parallel",),
                vmem_limit_bytes=vmem_limit),
        )(ex2, po2, ne2, seg)
        # TODO(synk): the 'none' path returns float32 even for bf16 inputs
        # (reference would return bf16); intentional and numerically benign.
        return out.reshape(-1)[:B].reshape(lead)

    if reduction not in ("mean", "sum"):
        raise ValueError(f"unknown reduction: {reduction}")

    # Leading 2-way "parallel" split so v7x's two TensorCores each reduce half
    # of the tiles; harmless on single-core v5e/v6e.
    num_splits = 2 if num_tiles >= 2 else 1
    tiles_per_split = pl.cdiv(num_tiles, num_splits)
    overhang = (num_splits * tiles_per_split) != num_tiles
    rows_per_tile = tbp * g
    need_mask = (num_splits * tiles_per_split * rows_per_tile) != B

    if overhang:
        def in_map(c, i):
            # Clamp so overhang steps re-read the last valid tile (fully masked).
            return (jnp.minimum(c * tiles_per_split + i, num_tiles - 1), 0)
    else:
        def in_map(c, i):
            return (c * tiles_per_split + i, 0)

    kernel = functools.partial(
        _repen_reduce_kernel,
        total_rows=B, rows_per_tile=rows_per_tile, group=g,
        tiles_per_split=tiles_per_split,
        do_mean=(reduction == "mean"), need_mask=need_mask, use_mxu=use_mxu)

    # TODO(synk): on v7x, confirm in xprof that the 2-way split lands on both
    # TensorCores; if not, switch the first axis to pltpu.CORE_PARALLEL.
    out = pl.pallas_call(
        kernel,
        out_shape=jax.ShapeDtypeStruct((num_splits * 8, 128), jnp.float32),
        grid_spec=pltpu.PrefetchScalarGridSpec(
            num_scalar_prefetch=0,
            grid=(num_splits, tiles_per_split),
            in_specs=[pl.BlockSpec((tbp, W), in_map)] * 3
            + [pl.BlockSpec((W, 128), lambda c, i: (0, 0))],
            out_specs=pl.BlockSpec((8, 128), lambda c, i: (c, 0)),
            scratch_shapes=[pltpu.VMEM((8, 128), jnp.float32)],
        ),
        compiler_params=pltpu.CompilerParams(
            dimension_semantics=("parallel", "arbitrary"),
            vmem_limit_bytes=vmem_limit),
    )(ex2, po2, ne2, seg)

    partials = out.reshape(num_splits, 8, 128)[:, 0, 0]   # one partial per split
    return jnp.sum(partials)


def repen_loss_ref(example, positive, negative, reduction="mean"):
    pos_d = jnp.sum(jnp.square(example - positive), axis=-1)
    neg_d = jnp.sum(jnp.square(example - negative), axis=-1)
    loss = jax.nn.relu(_MARGIN - (neg_d - pos_d))
    if reduction == "mean":
        return jnp.mean(loss)
    if reduction == "sum":
        return jnp.sum(loss)
    return loss


# --------------------------------------------------------------------------
# Self-test
# --------------------------------------------------------------------------
if __name__ == "__main__":
    key = jax.random.PRNGKey(0)
    keys = jax.random.split(key, 4)

    def run_case(k, B, D, dtype, block_rows=None):
        k1, k2, k3 = jax.random.split(k, 3)
        ex = jax.random.normal(k1, (B, D), dtype=jnp.float32)
        po = ex + 0.1 * jax.random.normal(k2, (B, D), dtype=jnp.float32)
        ne = ex + jax.random.normal(k3, (B, D), dtype=jnp.float32)
        ex, po, ne = (a.astype(dtype) for a in (ex, po, ne))
        exf, pof, nef = (a.astype(jnp.float32) for a in (ex, po, ne))
        for reduction in ("mean", "sum", "none"):
            got = jax.block_until_ready(
                repen_loss(ex, po, ne, reduction, block_rows=block_rows))
            ref = repen_loss_ref(exf, pof, nef, reduction)
            atol = 0.5 * B if reduction == "sum" else 0.5
            assert jnp.allclose(got, ref, rtol=2e-3, atol=atol), (
                B, D, str(dtype), reduction, got, ref)

    # Small REPEN-like shapes (batch, rep_dim): packed path (D=32 -> 4 rows/vreg row).
    run_case(keys[0], 16, 32, jnp.float32)
    # Ragged, multi-tile, 2-way-split + overhang path (forced small tile).
    run_case(keys[1], 300, 32, jnp.float32, block_rows=64)
    # Non-packable feature width (g == 1, XLU fallback) with a ragged batch.
    run_case(keys[2], 17, 40, jnp.float32)
    # bf16 inputs (16-sublane rounding, f32 compute path).
    run_case(keys[3], 64, 32, jnp.bfloat16)

    print("KERNEL_OK")
</pallas_src>

<mosaic_0001>
module attributes {stable_mosaic.version = 11 : i64} {
  func.func @_repen_reduce_kernel(%arg0: i32, %arg1: i32, %arg2: memref<8x128xf32, #tpu.memory_space<vmem>>, %arg3: memref<8x128xf32, #tpu.memory_space<vmem>>, %arg4: memref<8x128xf32, #tpu.memory_space<vmem>>, %arg5: memref<128x128xf32, #tpu.memory_space<vmem>>, %arg6: memref<8x128xf32, #tpu.memory_space<vmem>>, %arg7: memref<8x128xf32, #tpu.memory_space<vmem>>) attributes {dimension_semantics = [#tpu.dimension_semantics<parallel>, #tpu.dimension_semantics<arbitrary>], iteration_bounds = array<i64: 1, 1>, scalar_prefetch = 0 : i64, scratch_operands = 1 : i64, tpu.core_type = #tpu.core_type<tc>, window_params = [{transform_indices = @transform_0, window_bounds = array<i64: 8, 128>}, {transform_indices = @transform_1, window_bounds = array<i64: 8, 128>}, {transform_indices = @transform_2, window_bounds = array<i64: 8, 128>}, {pipeline_mode = #tpu.pipeline_mode<synchronous>, transform_indices = @transform_3, window_bounds = array<i64: 128, 128>}, {transform_indices = @transform_4, window_bounds = array<i64: 8, 128>}]} {
    %c0_i32 = arith.constant 0 : i32
    %0 = arith.cmpi eq, %arg1, %c0_i32 : i32
    %1 = arith.extui %0 : i1 to i32
    %c0_i32_0 = arith.constant 0 : i32
    %2 = arith.cmpi ne, %1, %c0_i32_0 : i32
    scf.if %2 {
      %cst_24 = arith.constant 0.000000e+00 : f32
      %55 = vector.broadcast %cst_24 : f32 to vector<8x128xf32>
      %c0_25 = arith.constant 0 : index
      %c0_26 = arith.constant 0 : index
      %56 = vector.load %arg7[%c0_25, %c0_26] : memref<8x128xf32, #tpu.memory_space<vmem>>, vector<8x128xf32>
      tpu.vector_store %arg7[%c0_25, %c0_26], %55 {strides = array<i32>} : memref<8x128xf32, #tpu.memory_space<vmem>>, vector<8x128xf32>,
    } else {
    }
    %c0 = arith.constant 0 : index
    %c0_1 = arith.constant 0 : index
    %3 = vector.load %arg2[%c0, %c0_1] : memref<8x128xf32, #tpu.memory_space<vmem>>, vector<8x128xf32>
    %c0_2 = arith.constant 0 : index
    %c0_3 = arith.constant 0 : index
    %4 = vector.load %arg3[%c0_2, %c0_3] : memref<8x128xf32, #tpu.memory_space<vmem>>, vector<8x128xf32>
    %c0_4 = arith.constant 0 : index
    %c0_5 = arith.constant 0 : index
    %5 = vector.load %arg4[%c0_4, %c0_5] : memref<8x128xf32, #tpu.memory_space<vmem>>, vector<8x128xf32>
    %6 = arith.subf %3, %5 : vector<8x128xf32>
    %7 = arith.mulf %6, %6 : vector<8x128xf32>
    %8 = arith.subf %3, %4 : vector<8x128xf32>
    %9 = arith.mulf %8, %8 : vector<8x128xf32>
    %10 = arith.subf %7, %9 : vector<8x128xf32>
    %c0_6 = arith.constant 0 : index
    %c0_7 = arith.constant 0 : index
    %11 = vector.load %arg5[%c0_6, %c0_7] : memref<128x128xf32, #tpu.memory_space<vmem>>, vector<128x128xf32>
    %cst = arith.constant dense<0.000000e+00> : vector<8x128xf32>
    %12 = tpu.matmul %10, %11, %cst {dimension_numbers = #tpu.dot_dimension_numbers<[1], [0], [0], [1], [0, 0, 1, 1], [], []>} : vector<8x128xf32>, vector<128x128xf32>, vector<8x128xf32> -> vector<8x128xf32>
    %cst_8 = arith.constant 1.000000e+03 : f32
    %13 = vector.broadcast %cst_8 : f32 to vector<8x128xf32>
    %14 = arith.subf %13, %12 : vector<8x128xf32>
    %cst_9 = arith.constant 0.000000e+00 : f32
    %15 = vector.broadcast %cst_9 : f32 to vector<8x128xf32>
    %16 = arith.maximumf %14, %15 : vector<8x128xf32>
    %c1_i32 = arith.constant 1 : i32
    %17 = arith.muli %arg0, %c1_i32 : i32
    %18 = arith.addi %17, %arg1 : i32
    %19 = tpu.iota {dimensions = array<i32: 0>} : vector<8x128xi32>
    %20 = tpu.iota {dimensions = array<i32: 1>} : vector<8x128xi32>
    %c32_i32 = arith.constant 32 : i32
    %21 = arith.muli %18, %c32_i32 : i32
    %c4_i32 = arith.constant 4 : i32
    %22 = vector.broadcast %c4_i32 : i32 to vector<8x128xi32>
    %23 = arith.muli %19, %22 : vector<8x128xi32>
    %24 = vector.broadcast %21 : i32 to vector<8x128xi32>
    %25 = arith.addi %24, %23 : vector<8x128xi32>
    %c4_i32_10 = arith.constant 4 : i32
    %c0_i32_11 = arith.constant 0 : i32
    %26 = arith.cmpi eq, %c4_i32_10, %c0_i32_11 : i32
    %c1_i32_12 = arith.constant 1 : i32
    %27 = arith.select %26, %c1_i32_12, %c4_i32_10 : i32
    %28 = vector.broadcast %27 : i32 to vector<8x128xi32>
    %29 = arith.remsi %20, %28 : vector<8x128xi32>
    %c0_i32_13 = arith.constant 0 : i32
    %30 = vector.broadcast %c0_i32_13 : i32 to vector<8x128xi32>
    %31 = arith.cmpi ne, %29, %30 : vector<8x128xi32>
    %c0_i32_14 = arith.constant 0 : i32
    %32 = vector.broadcast %c0_i32_14 : i32 to vector<8x128xi32>
    %33 = arith.cmpi slt, %29, %32 : vector<8x128xi32>
    %c0_i32_15 = arith.constant 0 : i32
    %34 = arith.cmpi slt, %27, %c0_i32_15 : i32
    %35 = vector.broadcast %34 : i1 to vector<8x128xi1>
    %36 = vector.broadcast %35 : vector<8x128xi1> to vector<8x128xi1>
    %37 = arith.xori %33, %36 : vector<8x128xi1>
    %38 = arith.andi %37, %31 : vector<8x128xi1>
    %39 = vector.broadcast %27 : i32 to vector<8x128xi32>
    %40 = arith.addi %29, %39 : vector<8x128xi32>
    %41 = arith.select %38, %40, %29 : vector<8x128xi1>, vector<8x128xi32>
    %42 = arith.addi %25, %41 : vector<8x128xi32>
    %c16_i32 = arith.constant 16 : i32
    %43 = vector.broadcast %c16_i32 : i32 to vector<8x128xi32>
    %44 = arith.cmpi slt, %42, %43 : vector<8x128xi32>
    %cst_16 = arith.constant 0.000000e+00 : f32
    %45 = vector.broadcast %cst_16 : f32 to vector<8x128xf32>
    %46 = arith.select %44, %16, %45 : vector<8x128xi1>, vector<8x128xf32>
    %c0_17 = arith.constant 0 : index
    %c0_18 = arith.constant 0 : index
    %47 = vector.load %arg7[%c0_17, %c0_18] : memref<8x128xf32, #tpu.memory_space<vmem>>, vector<8x128xf32>
    %48 = vector.shape_cast %46 : vector<8x128xf32> to vector<1x8x128xf32>
    %cst_19 = arith.constant dense<0.000000e+00> : vector<8x128xf32>
    %49 = vector.multi_reduction <add>, %48, %cst_19 [0] : vector<1x8x128xf32> to vector<8x128xf32>
    %50 = arith.addf %47, %49 : vector<8x128xf32>
    %c0_20 = arith.constant 0 : index
    %c0_21 = arith.constant 0 : index
    %51 = vector.load %arg7[%c0_20, %c0_21] : memref<8x128xf32, #tpu.memory_space<vmem>>, vector<8x128xf32>
    tpu.vector_store %arg7[%c0_20, %c0_21], %50 {strides = array<i32>} : memref<8x128xf32, #tpu.memory_space<vmem>>, vector<8x128xf32>,
    %c0_i32_22 = arith.constant 0 : i32
    %52 = arith.cmpi eq, %arg1, %c0_i32_22 : i32
    %53 = arith.extui %52 : i1 to i32
    %c0_i32_23 = arith.constant 0 : i32
    %54 = arith.cmpi ne, %53, %c0_i32_23 : i32
    scf.if %54 {
      %c0_24 = arith.constant 0 : index
      %c0_25 = arith.constant 0 : index
      %55 = vector.load %arg7[%c0_24, %c0_25] : memref<8x128xf32, #tpu.memory_space<vmem>>, vector<8x128xf32>
      %56 = vector.shape_cast %55 : vector<8x128xf32> to vector<1x8x128xf32>
      %cst_26 = arith.constant dense<0.000000e+00> : vector<1xf32>
      %57 = vector.multi_reduction <add>, %56, %cst_26 [1, 2] : vector<1x8x128xf32> to vector<1xf32>
      %58 = vector.shape_cast %57 : vector<1xf32> to vector<1x1x1xf32>
      %59 = vector.extract %58[0, 0, 0] : f32 from vector<1x1x1xf32>
      %cst_27 = arith.constant 3.125000e-02 : f32
      %60 = arith.mulf %59, %cst_27 : f32
      %cst_28 = arith.constant 6.250000e-02 : f32
      %61 = arith.mulf %60, %cst_28 : f32
      %62 = vector.broadcast %61 : f32 to vector<8x128xf32>
      %c0_29 = arith.constant 0 : index
      %c0_30 = arith.constant 0 : index
      %63 = vector.load %arg6[%c0_29, %c0_30] : memref<8x128xf32, #tpu.memory_space<vmem>>, vector<8x128xf32>
      tpu.vector_store %arg6[%c0_29, %c0_30], %62 {strides = array<i32>} : memref<8x128xf32, #tpu.memory_space<vmem>>, vector<8x128xf32>,
    } else {
    }
    return
  }
  func.func @transform_0(%arg0: i32, %arg1: i32) -> (i32, i32) {
    %c1_i32 = arith.constant 1 : i32
    %0 = arith.muli %arg0, %c1_i32 : i32
    %1 = arith.addi %0, %arg1 : i32
    %c0_i32 = arith.constant 0 : i32
    %c0_i32_0 = arith.constant 0 : i32
    return %1, %c0_i32 : i32, i32
  }
  func.func @transform_1(%arg0: i32, %arg1: i32) -> (i32, i32) {
    %c1_i32 = arith.constant 1 : i32
    %0 = arith.muli %arg0, %c1_i32 : i32
    %1 = arith.addi %0, %arg1 : i32
    %c0_i32 = arith.constant 0 : i32
    %c0_i32_0 = arith.constant 0 : i32
    return %1, %c0_i32 : i32, i32
  }
  func.func @transform_2(%arg0: i32, %arg1: i32) -> (i32, i32) {
    %c1_i32 = arith.constant 1 : i32
    %0 = arith.muli %arg0, %c1_i32 : i32
    %1 = arith.addi %0, %arg1 : i32
    %c0_i32 = arith.constant 0 : i32
    %c0_i32_0 = arith.constant 0 : i32
    return %1, %c0_i32 : i32, i32
  }
  func.func @transform_3(%arg0: i32, %arg1: i32) -> (i32, i32) {
    %c0_i32 = arith.constant 0 : i32
    %c0_i32_0 = arith.constant 0 : i32
    %c0_i32_1 = arith.constant 0 : i32
    return %c0_i32, %c0_i32_0 : i32, i32
  }
  func.func @transform_4(%arg0: i32, %arg1: i32) -> (i32, i32) {
    %c0_i32 = arith.constant 0 : i32
    %c0_i32_0 = arith.constant 0 : i32
    return %arg0, %c0_i32 : i32, i32
  }
}

</mosaic_0001>

<llo_original>
// kernel: tpu_custom_call.1
$region0: #{tpu_custom_call.1}
  #allocation0 [shape = 'u32[]', space=smem, size = 0x4, offset = 0x4, fixed_abs, tag = 'smem constant byte address 0x4 - core index']
  #allocation1 [shape = 'u32[72,128]{1,0:T(1,128)}', space=vmem, size = 0x9000, scoped, tag = 'internal scratch']
  #allocation2 [shape = 'f32[8,128]{1,0:T(8,128)}', space=vmem, size = 0x1000, scoped, tag = 'scratch operand']
  %s0 = inlined_call_operand.hbm [shape: f32[4,128], index: 0, kind: input, shape index: {}]
  %s1 = inlined_call_operand.hbm [shape: f32[4,128], index: 1, kind: input, shape index: {}]
  %s2 = inlined_call_operand.hbm [shape: f32[4,128], index: 2, kind: input, shape index: {}]
  %s3 = inlined_call_operand.hbm [shape: f32[128,128], index: 3, kind: input, shape index: {}]
  %s4 = inlined_call_operand.hbm [shape: f32[8,128], index: 4, kind: output, shape index: {}]
  %s5 = sld [smem:[#allocation0]]
  $region50: #{tpu_custom_call.1} parent=0
    _
  %s7 = ssub.s32 1, %s5
  %s8 = scalar_select 0, %s7, %s5
  $region1: #{tpu_custom_call.1} parent=0
    #allocation3 [shape = 'u8[4096]{0}', space=vmem, size = 0x1000, scoped, tag = 'input window, operand 0, single buffered']
    #allocation4 [shape = 's32[1]{0}', space=sflag, size = 0x4, scoped, tag = 'scoped memory for tpu_custom_call.1']
    #allocation5 [shape = 's32[1]{0}', space=sflag, size = 0x4, scoped, tag = 'scoped memory for tpu_custom_call.1']
    #allocation6 [shape = 'u8[4096]{0}', space=vmem, size = 0x1000, scoped, tag = 'input window, operand 1, single buffered']
    #allocation7 [shape = 's32[1]{0}', space=sflag, size = 0x4, scoped, tag = 'scoped memory for tpu_custom_call.1']
    #allocation8 [shape = 'u8[4096]{0}', space=vmem, size = 0x1000, scoped, tag = 'input window, operand 2, single buffered']
    #allocation9 [shape = 'u8[65536]{0}', space=vmem, size = 0x10000, scoped, tag = 'input window, operand 3, single buffered']
    #allocation10 [shape = 's32[1]{0}', space=sflag, size = 0x4, scoped, tag = 'scoped memory for tpu_custom_call.1']
    #allocation11 [shape = 'u8[4096]{0}', space=vmem, size = 0x1000, scoped, tag = 'output window, operand 0, single buffered']
    %9 = vsyncpa [#allocation4], 0
    %10 = vsyncpa [#allocation7], 0
    %11 = vsyncpa [#allocation10], 0
    %12 = vsyncpa [#allocation5], 0
    // Predicated region
    $region2: #{tpu_custom_call.1} parent=1 // pred_check
      _
    $region3: #{tpu_custom_call.1} parent=1 // pred_check_branch
      %14 = sbr.rel (0) target = $region5
    $region4: #{tpu_custom_call.1} parent=1 // pred_region
      %s15 = sadd.s32 0, 0
      %s16 = smul.u32 2, %s15
      %s17 = ssub.s32 1, %s16
      %s18 = smul.u32 4, %s17
      %s19 = ssub.s32 8, %s18
      %s20 = sshll.u32 %s19, 4
      %21 = vsyncadd [#allocation4], %s20
      %p22 = scmp.ne.s32.totalorder 0, %s18
      %s23 = smul.addr %s16, 4
      %s24 = scalar_lea.hbm %s0, %s23
      %s25 = smul.u32 4, %s17
      %s26 = sshll.u32 %s24, 4
      %s27 = int_to_ptr.hbm [resolvable:$true] %s26
      %s28 = sshll.u32 [#allocation3], 4
      %s29 = int_to_ptr.vmem [resolvable:$true] %s28
      %s30 = sshll.u32 %s25, 4
      %34 = dma.hbm_to_vmem [thread:$0]  (%p22), %s27, %s30, %s29, [#allocation4], 64, 64, 4
    $region5: #{tpu_custom_call.1} parent=1 // pred_fallthru
      _
    // Predicated region
    $region6: #{tpu_custom_call.1} parent=1 // pred_check
      _
    $region7: #{tpu_custom_call.1} parent=1 // pred_check_branch
      %36 = sbr.rel (0) target = $region9
    $region8: #{tpu_custom_call.1} parent=1 // pred_region
      %s37 = sadd.s32 0, 0
      %s38 = smul.u32 2, %s37
      %s39 = ssub.s32 1, %s38
      %s40 = smul.u32 4, %s39
      %s41 = ssub.s32 8, %s40
      %s42 = sshll.u32 %s41, 4
      %43 = vsyncadd [#allocation7], %s42
      %p44 = scmp.ne.s32.totalorder 0, %s40
      %s45 = smul.addr %s38, 4
      %s46 = scalar_lea.hbm %s1, %s45
      %s47 = smul.u32 4, %s39
      %s48 = sshll.u32 %s46, 4
      %s49 = int_to_ptr.hbm [resolvable:$true] %s48
      %s50 = sshll.u32 [#allocation6], 4
      %s51 = int_to_ptr.vmem [resolvable:$true] %s50
      %s52 = sshll.u32 %s47, 4
      %56 = dma.hbm_to_vmem [thread:$0]  (%p44), %s49, %s52, %s51, [#allocation7], 64, 64, 4
    $region9: #{tpu_custom_call.1} parent=1 // pred_fallthru
      _
    // Predicated region
    $region10: #{tpu_custom_call.1} parent=1 // pred_check
      _
    $region11: #{tpu_custom_call.1} parent=1 // pred_check_branch
      %58 = sbr.rel (0) target = $region13
    $region12: #{tpu_custom_call.1} parent=1 // pred_region
      %s59 = sadd.s32 0, 0
      %s60 = smul.u32 2, %s59
      %s61 = ssub.s32 1, %s60
      %s62 = smul.u32 4, %s61
      %s63 = ssub.s32 8, %s62
      %s64 = sshll.u32 %s63, 4
      %65 = vsyncadd [#allocation7], %s64
      %p66 = scmp.ne.s32.totalorder 0, %s62
      %s67 = smul.addr %s60, 4
      %s68 = scalar_lea.hbm %s2, %s67
      %s69 = smul.u32 4, %s61
      %s70 = sshll.u32 %s68, 4
      %s71 = int_to_ptr.hbm [resolvable:$true] %s70
      %s72 = sshll.u32 [#allocation8], 4
      %s73 = int_to_ptr.vmem [resolvable:$true] %s72
      %s74 = sshll.u32 %s69, 4
      %78 = dma.hbm_to_vmem [thread:$0]  (%p66), %s71, %s74, %s73, [#allocation7], 64, 64, 4
    $region13: #{tpu_custom_call.1} parent=1 // pred_fallthru
      _
    // Predicated region
    $region14: #{tpu_custom_call.1} parent=1 // pred_check
      _
    $region15: #{tpu_custom_call.1} parent=1 // pred_check_branch
      %80 = sbr.rel (0) target = $region17
    $region16: #{tpu_custom_call.1} parent=1 // pred_region
      %82 = vsyncadd [#allocation10], 0
      %s83 = sshll.u32 %s3, 4
      %s84 = int_to_ptr.hbm [resolvable:$true] %s83
      %s85 = sshll.u32 [#allocation9], 4
      %s86 = int_to_ptr.vmem [resolvable:$true] %s85
      %91 = dma.hbm_to_vmem [thread:$0]  %s84, 2048, %s86, [#allocation10], 128, 128, 8
    $region17: #{tpu_custom_call.1} parent=1 // pred_fallthru
      _
    // Predicated region
    $region18: #{tpu_custom_call.1} parent=1 // pred_check
      _
    $region19: #{tpu_custom_call.1} parent=1 // pred_check_branch
      %93 = sbr.rel (0) target = $region21
    $region20: #{tpu_custom_call.1} parent=1 // pred_region
      %95 = dma.done [#allocation4], 128
    $region21: #{tpu_custom_call.1} parent=1 // pred_fallthru
      _
    // Predicated region
    $region22: #{tpu_custom_call.1} parent=1 // pred_check
      _
    $region23: #{tpu_custom_call.1} parent=1 // pred_check_branch
      %97 = sbr.rel (0) target = $region25
    $region24: #{tpu_custom_call.1} parent=1 // pred_region
      %99 = dma.done [#allocation7], 128
    $region25: #{tpu_custom_call.1} parent=1 // pred_fallthru
      _
    // Predicated region
    $region26: #{tpu_custom_call.1} parent=1 // pred_check
      _
    $region27: #{tpu_custom_call.1} parent=1 // pred_check_branch
      %101 = sbr.rel (0) target = $region29
    $region28: #{tpu_custom_call.1} parent=1 // pred_region
      %103 = dma.done [#allocation7], 128
    $region29: #{tpu_custom_call.1} parent=1 // pred_fallthru
      _
    // Predicated region
    $region30: #{tpu_custom_call.1} parent=1 // pred_check
      _
    $region31: #{tpu_custom_call.1} parent=1 // pred_check_branch
      %105 = sbr.rel (0) target = $region33
    $region32: #{tpu_custom_call.1} parent=1 // pred_region
      %107 = dma.done [#allocation10], 2048
    $region33: #{tpu_custom_call.1} parent=1 // pred_fallthru
      _
    %s108 = sadd.s32 0, 0
    %s109 = smul.u32 2, %s108
    %s110 = ssub.s32 1, %s109
    %s111 = smul.u32 4, %s110
    %s112 = sadd.s32 0, 0
    %s113 = smul.u32 2, %s112
    %s114 = ssub.s32 1, %s113
    %s115 = smul.u32 4, %s114
    %s116 = sadd.s32 0, 0
    %s117 = smul.u32 2, %s116
    %s118 = ssub.s32 1, %s117
    %s119 = smul.u32 4, %s118
    %p120 = scmp.eq.s32.totalorder 0, 0
    // Predicated region
    $region34: #{tpu_custom_call.1} parent=1 // pred_check
      %p121 = pneg %p120
    $region35: #{tpu_custom_call.1} parent=1 // pred_check_branch
      %123 = sbr.rel (%p121) target = $region37
    $region36: #{tpu_custom_call.1} parent=1 // pred_region
      %124 = vst [vmem:[#allocation2] sm:$0xff] 0.0
    $region37: #{tpu_custom_call.1} parent=1 // pred_fallthru
      _
    %v125 = vld [vmem:[#allocation3] sm:$0xff]
    %v126 = vld [vmem:[#allocation6] sm:$0xff]
    %v127 = vld [vmem:[#allocation8] sm:$0xff]
    %v128 = vsub.f32 %v125, %v127
    %v129 = vmul.f32 %v128, %v128
    %v130 = vsub.f32 %v125, %v126
    %v131 = vmul.f32 %v130, %v130
    %v132 = vsub.f32 %v129, %v131
    %v133 = vld [vmem:[#allocation9] sm:$0xff]
    %v134 = vld [vmem:[#allocation9 + $0x8] sm:$0xff]
    %v135 = vld [vmem:[#allocation9 + $0x10] sm:$0xff]
    %v136 = vld [vmem:[#allocation9 + $0x18] sm:$0xff]
    %v137 = vld [vmem:[#allocation9 + $0x20] sm:$0xff]
    %v138 = vld [vmem:[#allocation9 + $0x28] sm:$0xff]
    %v139 = vld [vmem:[#allocation9 + $0x30] sm:$0xff]
    %v140 = vld [vmem:[#allocation9 + $0x38] sm:$0xff]
    %v141 = vld [vmem:[#allocation9 + $0x40] sm:$0xff]
    %v142 = vld [vmem:[#allocation9 + $0x48] sm:$0xff]
    %v143 = vld [vmem:[#allocation9 + $0x50] sm:$0xff]
    %v144 = vld [vmem:[#allocation9 + $0x58] sm:$0xff]
    %v145 = vld [vmem:[#allocation9 + $0x60] sm:$0xff]
    %v146 = vld [vmem:[#allocation9 + $0x68] sm:$0xff]
    %v147 = vld [vmem:[#allocation9 + $0x70] sm:$0xff]
    %v148 = vld [vmem:[#allocation9 + $0x78] sm:$0xff]
    %149 = vmatpush.msra.mxu0 %v148
    %150 = vmatpush.msra.mxu0 %v147
    %151 = vmatpush.msra.mxu0 %v146
    %152 = vmatpush.msra.mxu0 %v145
    %153 = vmatpush.msra.mxu0 %v144
    %154 = vmatpush.msra.mxu0 %v143
    %155 = vmatpush.msra.mxu0 %v142
    %156 = vmatpush.msra.mxu0 %v141
    %157 = vmatpush.msra.mxu0 %v140
    %158 = vmatpush.msra.mxu0 %v139
    %159 = vmatpush.msra.mxu0 %v138
    %160 = vmatpush.msra.mxu0 %v137
    %161 = vmatpush.msra.mxu0 %v136
    %162 = vmatpush.msra.mxu0 %v135
    %163 = vmatpush.msra.mxu0 %v134
    %164 = vmatpush.msra.mxu0 %v133
    %165 = vmatmul.f32.gmra.mxu0 %v132
    %v166 = vpop.f32.mrf.mxu0
    %v167 = vadd.f32 0.0, %v166
    %168 = vdwg.mxu0
    %v169 = vsub.f32 1000.0, %v167
    %v170 = vmax.f32 %v169, 0.0
    %s171 = sadd.s32 0, 0
    %v172 = vlaneseq
    %v173 = vshrl.u32 %v172, 7
    %v174 = vlaneseq
    %v175 = vand.u32 %v174, 127
    %s176 = smul.u32 %s171, 32
    %v177 = vmul.u32 %v173, 4
    %v178 = vstv %s176
    %v179 = vadd.s32 %v178, %v177
    %vm180 = vcmp.lt.s32.totalorder %v175, 0
    %v181 = vsub.s32 0, %v175
    %v182 = vsel %vm180, %v181, %v175
    %v183 = vshrl.u32 %v182, 2
    %v184 = vand.u32 %v182, 3
    %v185 = vsub.s32 0, %v184
    %v186 = vsel %vm180, %v185, %v184
    %vm187 = vcmp.ne.s32.totalorder %v186, 0
    %vm188 = vcmp.lt.s32.totalorder %v186, 0
    %vm189 = vmand %vm188, %vm187
    %v190 = vadd.s32 %v186, 4
    %v191 = vsel %vm189, %v190, %v186
    %v192 = vadd.s32 %v179, %v191
    %vm193 = vcmp.lt.s32.totalorder %v192, 16
    %v194 = vsel %vm193, %v170, 0.0
    %v195 = vld [vmem:[#allocation2] sm:$0xff]
    %v196 = vadd.f32 %v194, 0.0
    %v197 = vadd.f32 %v195, %v196
    %198 = vst [vmem:[#allocation2] sm:$0xff] %v197
    // Predicated region
    $region38: #{tpu_custom_call.1} parent=1 // pred_check
      %p199 = pneg %p120
    $region39: #{tpu_custom_call.1} parent=1 // pred_check_branch
      %201 = sbr.rel (%p199) target = $region41
    $region40: #{tpu_custom_call.1} parent=1 // pred_region
      %v202 = vld [vmem:[#allocation2] sm:$0xff]
      %203 = vadd.xlane.f32.xlu0 %v202
      %v204 = vpop.xlane.xlu0 %203
      %v205 = vrot.slane %v204, 4
      %v206 = vadd.f32 %v204, %v205
      %v207 = vrot.slane %v206, 2
      %v208 = vadd.f32 %v206, %v207
      %v209 = vrot.slane %v208, 1
      %v210 = vadd.f32 %v208, %v209
      %s211 = vtos %v210
      %s212 = smul.f32 %s211, 0.03125
      %s213 = smul.f32 %s212, 0.0625
      %v214 = vstv %s213
      %215 = vst [vmem:[#allocation11] sm:$0xff] %v214
    $region41: #{tpu_custom_call.1} parent=1 // pred_fallthru
      _
    // Predicated region
    $region42: #{tpu_custom_call.1} parent=1 // pred_check
      _
    $region43: #{tpu_custom_call.1} parent=1 // pred_check_branch
      %217 = sbr.rel (0) target = $region45
    $region44: #{tpu_custom_call.1} parent=1 // pred_region
      %219 = vsyncadd [#allocation5], 0
      %s221 = sshll.u32 [#allocation11], 4
      %s222 = int_to_ptr.vmem [resolvable:$true] %s221
      %s223 = sshll.u32 %s4, 4
      %s224 = int_to_ptr.hbm [resolvable:$true] %s223
      %226 = dma.vmem_to_hbm [thread:$0]  %s222, 128, %s224, [#allocation5]
    $region45: #{tpu_custom_call.1} parent=1 // pred_fallthru
      _
    // Predicated region
    $region46: #{tpu_custom_call.1} parent=1 // pred_check
      _
    $region47: #{tpu_custom_call.1} parent=1 // pred_check_branch
      %228 = sbr.rel (0) target = $region49
    $region48: #{tpu_custom_call.1} parent=1 // pred_region
      %230 = dma.done [#allocation5], 128
    $region49: #{tpu_custom_call.1} parent=1 // pred_fallthru
      _
    %231 = vsyncpa [#allocation4], 1
    %232 = vsyncpa [#allocation7], 1
    %233 = vsyncpa [#allocation10], 1
    %234 = vsyncpa [#allocation5], 1

</llo_original>
